<compile_context>
chip_gen: v5e
topology: v5e:2x2
jax: 0.10.0
libtpu: 0.0.40
codegen_flags: <defaults>
</compile_context>

<pallas_src>
import jax
import jax.numpy as jnp
from jax.experimental import pallas as pl
from jax.experimental.pallas import tpu as pltpu


def _lru_gate_kernel(x_ref, inp_ref, w_ref, wr_ref, o_ref):
    # w_ref / wr_ref: (1, lane) f32, broadcast over the row (sublane) axis.
    x = x_ref[...].astype(jnp.float32)       # (TB, lane)
    inp = inp_ref[...].astype(jnp.float32)   # (TB, lane)
    out = x * w_ref[...] + inp * wr_ref[...]
    o_ref[...] = out.astype(o_ref.dtype)


def _vmem_budget():
    """Return (live_buffer_budget_bytes, scoped_vmem_limit_bytes), per chip gen."""
    try:
        cap = pltpu.get_tpu_info().vmem_capacity_bytes
    except Exception:
        cap = 64 * 1024 * 1024  # be conservative (v7x has 64 MiB per TensorCore)
    if cap <= 80 * 1024 * 1024:
        # v7x-class: keep 3 streams x 2 double-buffers well under 64 MiB.
        return 40 * 1024 * 1024, 56 * 1024 * 1024
    # v5e / v6e: 128 MiB physical; still must raise the scoped limit (v5e default 16 MiB).
    return 48 * 1024 * 1024, 80 * 1024 * 1024


def custom_linear_layer(x, inp, weight):
    """x, inp: (..., size); weight: (size,). Returns x*w + inp*sqrt(1-w^2)."""
    assert x.shape == inp.shape
    size = weight.shape[0]
    assert x.shape[-1] == size

    orig_shape = x.shape
    out_dtype = x.dtype

    # ---- Parameter transform once, O(size), in f32 (not activation pre-scaling).
    w_f32 = weight.astype(jnp.float32)
    w = jnp.exp(-jnp.exp(w_f32)) - 1.0                    # in (-1, 0]
    wr = jnp.sqrt(jnp.maximum(1.0 - w * w, 0.0))          # guard for low precision

    # ---- Flatten leading dims (free reshape on contiguous data).
    x2 = x.reshape(-1, size)
    i2 = inp.reshape(-1, size)
    rows = x2.shape[0]

    if rows == 0:
        # Empty leading dims: nothing to compute.
        return jnp.zeros(orig_shape, dtype=out_dtype)

    # ---- Lane-densify when it is a FREE reshape (no padding copy):
    #      size divides 128 and rows % rep == 0  ->  pack rep rows per 128-lane row.
    if size < 128 and 128 % size == 0 and rows % (128 // size) == 0:
        rep = 128 // size
        lane = 128
        x2 = x2.reshape(-1, lane)
        i2 = i2.reshape(-1, lane)
        w_row = jnp.tile(w, rep).reshape(1, lane)
        wr_row = jnp.tile(wr, rep).reshape(1, lane)
    else:
        # Full-width last dim (equal to the array dim -> always a valid block).
        # TODO(synk): for sizes not commensurate with 128 (e.g. 96, 200) stores are
        # partially masked; a feature-dim pad would trade an extra input copy for
        # unmasked vst -- only worth it with profiling evidence.
        lane = size
        w_row = w.reshape(1, lane)
        wr_row = wr.reshape(1, lane)

    nrows = x2.shape[0]
    elem_bytes = x2.dtype.itemsize  # real I/O element size (blocks live in I/O dtype)

    # ---- Row-tile size from the generation-aware VMEM budget
    #      (3 streams x 2 double-buffers of (tb, lane) in the I/O dtype).
    budget, vmem_limit = _vmem_budget()
    tb_cap = budget // (6 * lane * elem_bytes)
    tb_cap = max(8, (tb_cap // 8) * 8)

    if nrows <= 8:
        # Too small to split into (8,*)-compliant tiles: single full-extent block.
        tb = nrows
    else:
        # At least 2 tiles so the parallel row axis can shard across v7x's 2 TCs.
        tb_two = ((nrows + 1) // 2 + 7) // 8 * 8
        tb = max(8, min(tb_cap, tb_two))

    grid_rows = -(-nrows // tb)   # ceil; ragged last block is clipped by Pallas

    out = pl.pallas_call(
        _lru_gate_kernel,
        out_shape=jax.ShapeDtypeStruct((nrows, lane), out_dtype),
        grid_spec=pl.GridSpec(
            grid=(grid_rows,),
            in_specs=[
                pl.BlockSpec((tb, lane), lambda i: (i, 0)),
                pl.BlockSpec((tb, lane), lambda i: (i, 0)),
                pl.BlockSpec((1, lane), lambda i: (0, 0)),
                pl.BlockSpec((1, lane), lambda i: (0, 0)),
            ],
            out_specs=pl.BlockSpec((tb, lane), lambda i: (i, 0)),
        ),
        compiler_params=pltpu.CompilerParams(
            dimension_semantics=("parallel",),
            vmem_limit_bytes=vmem_limit,
        ),
    )(x2, i2, w_row, wr_row)

    # Undo the (free) lane-dense reshape and restore the original shape.
    out = out.reshape(-1, size).reshape(orig_shape)
    return out


def _reference(x, inp, weight):
    w = jnp.exp(-jnp.exp(weight.astype(jnp.float32))) - 1.0
    wr = jnp.sqrt(1.0 - w ** 2)
    return (x.astype(jnp.float32) * w + inp.astype(jnp.float32) * wr).astype(x.dtype)


if __name__ == "__main__":
    key = jax.random.PRNGKey(0)
    k_w, k_x, k_i = jax.random.split(key, 3)

    batch, seq, size = 2, 8, 32
    dtype = jnp.float32

    weight = jax.random.normal(k_w, (size,), dtype=dtype)
    x = jax.random.normal(k_x, (batch, seq, size), dtype=dtype)
    inp = jax.random.normal(k_i, (batch, seq, size), dtype=dtype)

    out = custom_linear_layer(x, inp, weight)
    out = jax.block_until_ready(out)

    ref = _reference(x, inp, weight)
    assert out.shape == x.shape
    assert jnp.allclose(out, ref, atol=1e-5, rtol=1e-5)

    # Exercise a ragged / non-packable shape too (rows not divisible by rep).
    x_odd = jax.random.normal(k_x, (3, 7, size), dtype=dtype)
    i_odd = jax.random.normal(k_i, (3, 7, size), dtype=dtype)
    out_odd = jax.block_until_ready(custom_linear_layer(x_odd, i_odd, weight))
    assert jnp.allclose(out_odd, _reference(x_odd, i_odd, weight), atol=1e-5, rtol=1e-5)

    print("KERNEL_OK")
</pallas_src>

<mosaic_0001>
module attributes {stable_mosaic.version = 11 : i64} {
  func.func @_lru_gate_kernel(%arg0: i32, %arg1: memref<4x128xf32, #tpu.memory_space<vmem>>, %arg2: memref<4x128xf32, #tpu.memory_space<vmem>>, %arg3: memref<1x128xf32, #tpu.memory_space<vmem>>, %arg4: memref<1x128xf32, #tpu.memory_space<vmem>>, %arg5: memref<4x128xf32, #tpu.memory_space<vmem>>) attributes {dimension_semantics = [#tpu.dimension_semantics<parallel>], iteration_bounds = array<i64: 1>, scalar_prefetch = 0 : i64, scratch_operands = 0 : i64, tpu.core_type = #tpu.core_type<tc>, window_params = [{transform_indices = @transform_0, window_bounds = array<i64: 4, 128>}, {transform_indices = @transform_1, window_bounds = array<i64: 4, 128>}, {pipeline_mode = #tpu.pipeline_mode<synchronous>, transform_indices = @transform_2, window_bounds = array<i64: 1, 128>}, {pipeline_mode = #tpu.pipeline_mode<synchronous>, transform_indices = @transform_3, window_bounds = array<i64: 1, 128>}, {transform_indices = @transform_4, window_bounds = array<i64: 4, 128>}]} {
    %c0 = arith.constant 0 : index
    %c0_0 = arith.constant 0 : index
    %0 = vector.load %arg1[%c0, %c0_0] : memref<4x128xf32, #tpu.memory_space<vmem>>, vector<4x128xf32>
    %c0_1 = arith.constant 0 : index
    %c0_2 = arith.constant 0 : index
    %1 = vector.load %arg2[%c0_1, %c0_2] : memref<4x128xf32, #tpu.memory_space<vmem>>, vector<4x128xf32>
    %c0_3 = arith.constant 0 : index
    %c0_4 = arith.constant 0 : index
    %2 = vector.load %arg3[%c0_3, %c0_4] : memref<1x128xf32, #tpu.memory_space<vmem>>, vector<1x128xf32>
    %3 = vector.broadcast %2 : vector<1x128xf32> to vector<4x128xf32>
    %4 = arith.mulf %0, %3 : vector<4x128xf32>
    %c0_5 = arith.constant 0 : index
    %c0_6 = arith.constant 0 : index
    %5 = vector.load %arg4[%c0_5, %c0_6] : memref<1x128xf32, #tpu.memory_space<vmem>>, vector<1x128xf32>
    %6 = vector.broadcast %5 : vector<1x128xf32> to vector<4x128xf32>
    %7 = arith.mulf %1, %6 : vector<4x128xf32>
    %8 = arith.addf %4, %7 : vector<4x128xf32>
    %c0_7 = arith.constant 0 : index
    %c0_8 = arith.constant 0 : index
    %9 = vector.load %arg5[%c0_7, %c0_8] : memref<4x128xf32, #tpu.memory_space<vmem>>, vector<4x128xf32>
    tpu.vector_store %arg5[%c0_7, %c0_8], %8 {strides = array<i32>} : memref<4x128xf32, #tpu.memory_space<vmem>>, vector<4x128xf32>,
    return
  }
  func.func @transform_0(%arg0: i32) -> (i32, i32) {
    %c0_i32 = arith.constant 0 : i32
    %c0_i32_0 = arith.constant 0 : i32
    return %arg0, %c0_i32 : i32, i32
  }
  func.func @transform_1(%arg0: i32) -> (i32, i32) {
    %c0_i32 = arith.constant 0 : i32
    %c0_i32_0 = arith.constant 0 : i32
    return %arg0, %c0_i32 : i32, i32
  }
  func.func @transform_2(%arg0: i32) -> (i32, i32) {
    %c0_i32 = arith.constant 0 : i32
    %c0_i32_0 = arith.constant 0 : i32
    %c0_i32_1 = arith.constant 0 : i32
    return %c0_i32, %c0_i32_0 : i32, i32
  }
  func.func @transform_3(%arg0: i32) -> (i32, i32) {
    %c0_i32 = arith.constant 0 : i32
    %c0_i32_0 = arith.constant 0 : i32
    %c0_i32_1 = arith.constant 0 : i32
    return %c0_i32, %c0_i32_0 : i32, i32
  }
  func.func @transform_4(%arg0: i32) -> (i32, i32) {
    %c0_i32 = arith.constant 0 : i32
    %c0_i32_0 = arith.constant 0 : i32
    return %arg0, %c0_i32 : i32, i32
  }
}

</mosaic_0001>

<llo_original>
// kernel: tpu_custom_call.1
$region0: #{tpu_custom_call.1}
  #allocation0 [shape = 'u32[]', space=smem, size = 0x4, offset = 0x4, fixed_abs, tag = 'smem constant byte address 0x4 - core index']
  #allocation1 [shape = 'u32[72,128]{1,0:T(1,128)}', space=vmem, size = 0x9000, scoped, tag = 'internal scratch']
  %s0 = inlined_call_operand.hbm [shape: f32[4,128], index: 0, kind: input, shape index: {}]
  %s1 = inlined_call_operand.hbm [shape: f32[4,128], index: 1, kind: input, shape index: {}]
  %s2 = inlined_call_operand.vmem [shape: f32[1,128], index: 2, kind: input, shape index: {}]
  %s3 = inlined_call_operand.vmem [shape: f32[1,128], index: 3, kind: input, shape index: {}]
  %s4 = inlined_call_operand.hbm [shape: f32[4,128], index: 4, kind: output, shape index: {}]
  %s5 = sld [smem:[#allocation0]]
  $region34: #{tpu_custom_call.1} parent=0
    _
  %s7 = ssub.s32 1, %s5
  %s8 = scalar_select 0, %s7, %s5
  $region1: #{tpu_custom_call.1} parent=0
    #allocation2 [shape = 'u8[2048]{0}', space=vmem, size = 0x800, scoped, tag = 'input window, operand 0, single buffered']
    #allocation3 [shape = 's32[1]{0}', space=sflag, size = 0x4, scoped, tag = 'scoped memory for tpu_custom_call.1']
    #allocation4 [shape = 's32[1]{0}', space=sflag, size = 0x4, scoped, tag = 'scoped memory for tpu_custom_call.1']
    #allocation5 [shape = 'u8[2048]{0}', space=vmem, size = 0x800, scoped, tag = 'input window, operand 1, single buffered']
    #allocation6 [shape = 's32[1]{0}', space=sflag, size = 0x4, scoped, tag = 'scoped memory for tpu_custom_call.1']
    #allocation7 [shape = 'u8[2048]{0}', space=vmem, size = 0x800, scoped, tag = 'output window, operand 0, single buffered']
    %9 = vsyncpa [#allocation3], 0
    %10 = vsyncpa [#allocation6], 0
    %11 = vsyncpa [#allocation4], 0
    // Predicated region
    $region2: #{tpu_custom_call.1} parent=1 // pred_check
      _
    $region3: #{tpu_custom_call.1} parent=1 // pred_check_branch
      %13 = sbr.rel (0) target = $region5
    $region4: #{tpu_custom_call.1} parent=1 // pred_region
      %15 = vsyncadd [#allocation3], 0
      %s17 = sshll.u32 %s0, 4
      %s18 = int_to_ptr.hbm [resolvable:$true] %s17
      %s19 = sshll.u32 [#allocation2], 4
      %s20 = int_to_ptr.vmem [resolvable:$true] %s19
      %22 = dma.hbm_to_vmem [thread:$0]  %s18, 64, %s20, [#allocation3]
    $region5: #{tpu_custom_call.1} parent=1 // pred_fallthru
      _
    // Predicated region
    $region6: #{tpu_custom_call.1} parent=1 // pred_check
      _
    $region7: #{tpu_custom_call.1} parent=1 // pred_check_branch
      %24 = sbr.rel (0) target = $region9
    $region8: #{tpu_custom_call.1} parent=1 // pred_region
      %26 = vsyncadd [#allocation6], 0
      %s28 = sshll.u32 %s1, 4
      %s29 = int_to_ptr.hbm [resolvable:$true] %s28
      %s30 = sshll.u32 [#allocation5], 4
      %s31 = int_to_ptr.vmem [resolvable:$true] %s30
      %33 = dma.hbm_to_vmem [thread:$0]  %s29, 64, %s31, [#allocation6]
    $region9: #{tpu_custom_call.1} parent=1 // pred_fallthru
      _
    // Predicated region
    $region10: #{tpu_custom_call.1} parent=1 // pred_check
      _
    $region11: #{tpu_custom_call.1} parent=1 // pred_check_branch
      %35 = sbr.rel (0) target = $region13
    $region12: #{tpu_custom_call.1} parent=1 // pred_region
      _
    $region13: #{tpu_custom_call.1} parent=1 // pred_fallthru
      _
    // Predicated region
    $region14: #{tpu_custom_call.1} parent=1 // pred_check
      _
    $region15: #{tpu_custom_call.1} parent=1 // pred_check_branch
      %37 = sbr.rel (0) target = $region17
    $region16: #{tpu_custom_call.1} parent=1 // pred_region
      _
    $region17: #{tpu_custom_call.1} parent=1 // pred_fallthru
      _
    // Predicated region
    $region18: #{tpu_custom_call.1} parent=1 // pred_check
      _
    $region19: #{tpu_custom_call.1} parent=1 // pred_check_branch
      %39 = sbr.rel (0) target = $region21
    $region20: #{tpu_custom_call.1} parent=1 // pred_region
      %41 = dma.done [#allocation3], 64
    $region21: #{tpu_custom_call.1} parent=1 // pred_fallthru
      _
    // Predicated region
    $region22: #{tpu_custom_call.1} parent=1 // pred_check
      _
    $region23: #{tpu_custom_call.1} parent=1 // pred_check_branch
      %43 = sbr.rel (0) target = $region25
    $region24: #{tpu_custom_call.1} parent=1 // pred_region
      %45 = dma.done [#allocation6], 64
    $region25: #{tpu_custom_call.1} parent=1 // pred_fallthru
      _
    %v46 = vld [vmem:[#allocation2] sm:$0xf]
    %v47 = vld [vmem:[#allocation5] sm:$0xf]
    %v48 = vld [vmem:[%s2] sm:$0x1]
    %v50 = vperm.slane %v48, 0
    %v52 = vmul.f32 %v46, %v50
    %v53 = vld [vmem:[%s3] sm:$0x1]
    %v55 = vperm.slane %v53, 0
    %v57 = vmul.f32 %v47, %v55
    %v58 = vadd.f32 %v52, %v57
    %59 = vst [vmem:[#allocation7] sm:$0xf] %v58
    // Predicated region
    $region26: #{tpu_custom_call.1} parent=1 // pred_check
      _
    $region27: #{tpu_custom_call.1} parent=1 // pred_check_branch
      %61 = sbr.rel (0) target = $region29
    $region28: #{tpu_custom_call.1} parent=1 // pred_region
      %63 = vsyncadd [#allocation4], 0
      %s65 = sshll.u32 [#allocation7], 4
      %s66 = int_to_ptr.vmem [resolvable:$true] %s65
      %s67 = sshll.u32 %s4, 4
      %s68 = int_to_ptr.hbm [resolvable:$true] %s67
      %70 = dma.vmem_to_hbm [thread:$0]  %s66, 64, %s68, [#allocation4]
    $region29: #{tpu_custom_call.1} parent=1 // pred_fallthru
      _
    // Predicated region
    $region30: #{tpu_custom_call.1} parent=1 // pred_check
      _
    $region31: #{tpu_custom_call.1} parent=1 // pred_check_branch
      %72 = sbr.rel (0) target = $region33
    $region32: #{tpu_custom_call.1} parent=1 // pred_region
      %74 = dma.done [#allocation4], 64
    $region33: #{tpu_custom_call.1} parent=1 // pred_fallthru
      _
    %75 = vsyncpa [#allocation3], 1
    %76 = vsyncpa [#allocation6], 1
    %77 = vsyncpa [#allocation4], 1

</llo_original>
